<compile_context>
chip_gen: v5e
topology: v5e:2x2
jax: 0.10.0
libtpu: 0.0.40
codegen_flags: <defaults>
</compile_context>

<pallas_src>
import jax
import jax.numpy as jnp
from jax.experimental import pallas as pl
from jax.experimental.pallas import tpu as pltpu


def _actnorm_affine_kernel(x_ref, scale_ref, bias_ref, o_ref):
    # Single FMA per element. Broadcasting covers both launch layouts:
    #   rows path: x (TM, TN), scale/bias (TM, 1) -> broadcast over lanes
    #   cols path: x (TM, TN), scale/bias (1, TN) -> broadcast over sublanes
    o_ref[...] = x_ref[...] * scale_ref[...] + bias_ref[...]


def _round_up(x, m):
    return ((x + m - 1) // m) * m


def _pick_tile(dim, preferred, multiple):
    """Tile size: full dim if tiny, else a multiple of `multiple`, capped at `preferred`."""
    if dim <= multiple:
        return dim                        # full-dim block — always legal
    if dim <= preferred:
        return _round_up(dim, multiple)   # single (possibly edge-padded) block
    return preferred                      # `preferred` is already a multiple of `multiple`


def _launch(x2d, scale2d, bias2d, *, params_follow_rows):
    """Run the elementwise affine on a 2-D view with lane-dense tiling."""
    R, L = x2d.shape
    itemsize = jnp.dtype(x2d.dtype).itemsize
    sub_mult = max(8, 32 // itemsize)          # 8 for f32, 16 for bf16, 32 for int8
    tm = _pick_tile(R, 256, sub_mult)
    tn = _pick_tile(L, 1024, 128)

    # Input + output, each double-buffered, plus params; 2x headroom, 8 MiB floor.
    block_bytes = tm * tn * itemsize
    vmem_limit = int(max(8 * block_bytes, 8 * 1024 * 1024))

    if params_follow_rows:
        p_block = (tm, 1)                      # params are (R, 1): follow the row tile
        p_map = lambda i, j: (i, 0)
    else:
        p_block = (1, tn)                      # params are (1, L): follow the lane tile
        p_map = lambda i, j: (0, j)

    return pl.pallas_call(
        _actnorm_affine_kernel,
        out_shape=jax.ShapeDtypeStruct((R, L), x2d.dtype),
        grid=(pl.cdiv(R, tm), pl.cdiv(L, tn)),
        in_specs=[
            pl.BlockSpec((tm, tn), lambda i, j: (i, j)),
            pl.BlockSpec(p_block, p_map),
            pl.BlockSpec(p_block, p_map),
        ],
        out_specs=pl.BlockSpec((tm, tn), lambda i, j: (i, j)),
        compiler_params=pltpu.CompilerParams(
            dimension_semantics=("parallel", "parallel"),
            vmem_limit_bytes=vmem_limit,
        ),
    )(x2d, scale2d, bias2d)


def actnorm_forward(x, loc, scale, *, logdet=False):
    """ActNorm forward.

    x:     (N, C, H, W) or (N, C)  (the 2-D case mirrors the PyTorch squeeze path)
    loc:   (1, C, 1, 1)
    scale: (1, C, 1, 1)
    """
    # Keep parameter math (and the logdet reduction) in f32 regardless of x dtype.
    loc_f32 = loc.reshape(-1).astype(jnp.float32)        # (C,)
    scale_f32 = scale.reshape(-1).astype(jnp.float32)    # (C,)
    bias_f32 = scale_f32 * loc_f32                       # scale*(x+loc) == x*scale + bias

    if x.ndim == 2:
        # Squeeze path: keep (N, C) with C lane-dense; params broadcast along sublanes.
        N, C = x.shape
        H = W = 1
        scale_in = scale_f32.astype(x.dtype)[None, :]    # (1, C)
        bias_in = bias_f32.astype(x.dtype)[None, :]      # (1, C)
        h = _launch(x, scale_in, bias_in, params_follow_rows=False)
    else:
        N, C, H, W = x.shape
        HW = H * W
        x2 = x.reshape(N * C, HW)                        # free, contiguous for NCHW
        scale_in = jnp.tile(scale_f32.astype(x.dtype), (N,))[:, None]  # (N*C, 1)
        bias_in = jnp.tile(bias_f32.astype(x.dtype), (N,))[:, None]    # (N*C, 1)
        h = _launch(x2, scale_in, bias_in, params_follow_rows=True).reshape(N, C, H, W)

    if logdet:
        # Parameter-only reduction over C — tiny, kept in plain JAX and in f32.
        ld = (H * W) * jnp.sum(jnp.log(jnp.abs(scale_f32)))
        ld = (ld * jnp.ones((N,), jnp.float32)).astype(x.dtype)
        return h, ld
    return h


if __name__ == "__main__":
    key = jax.random.PRNGKey(0)
    kx, kl, ks, k2 = jax.random.split(key, 4)

    N, C, H, W = 2, 4, 16, 16
    x = jax.random.normal(kx, (N, C, H, W), dtype=jnp.float32)

    # Deterministic, non-trivial parameters with the module's shapes (1, C, 1, 1).
    loc = jax.random.normal(kl, (1, C, 1, 1), dtype=jnp.float32)
    scale = 0.5 + jax.random.uniform(ks, (1, C, 1, 1), dtype=jnp.float32)

    # ---- 4-D path ----
    h, logdet = actnorm_forward(x, loc, scale, logdet=True)
    h = jax.block_until_ready(h)
    logdet = jax.block_until_ready(logdet)

    h_ref = scale * (x + loc)
    ld_ref = H * W * jnp.sum(jnp.log(jnp.abs(scale))) * jnp.ones((N,), jnp.float32)

    assert h.shape == (N, C, H, W)
    assert logdet.shape == (N,)
    assert jnp.allclose(h, h_ref, atol=1e-5, rtol=1e-5)
    assert jnp.allclose(logdet, ld_ref, atol=1e-5, rtol=1e-5)

    # ---- 2-D (squeeze) path ----
    x2d = jax.random.normal(k2, (N, C), dtype=jnp.float32)
    h2, logdet2 = actnorm_forward(x2d, loc, scale, logdet=True)
    h2 = jax.block_until_ready(h2)
    logdet2 = jax.block_until_ready(logdet2)

    h2_ref = (scale * (x2d[:, :, None, None] + loc))[:, :, 0, 0]
    ld2_ref = jnp.sum(jnp.log(jnp.abs(scale))) * jnp.ones((N,), jnp.float32)

    assert h2.shape == (N, C)
    assert jnp.allclose(h2, h2_ref, atol=1e-5, rtol=1e-5)
    assert jnp.allclose(logdet2, ld2_ref, atol=1e-5, rtol=1e-5)

    print("KERNEL_OK")
</pallas_src>

<mosaic_0001>
module attributes {stable_mosaic.version = 11 : i64} {
  func.func @_actnorm_affine_kernel(%arg0: i32, %arg1: i32, %arg2: memref<8x256xf32, #tpu.memory_space<vmem>>, %arg3: memref<8x1xf32, #tpu.memory_space<vmem>>, %arg4: memref<8x1xf32, #tpu.memory_space<vmem>>, %arg5: memref<8x256xf32, #tpu.memory_space<vmem>>) attributes {dimension_semantics = [#tpu.dimension_semantics<parallel>, #tpu.dimension_semantics<parallel>], iteration_bounds = array<i64: 1, 1>, scalar_prefetch = 0 : i64, scratch_operands = 0 : i64, tpu.core_type = #tpu.core_type<tc>, window_params = [{transform_indices = @transform_0, window_bounds = array<i64: 8, 256>}, {transform_indices = @transform_1, window_bounds = array<i64: 8, 1>}, {transform_indices = @transform_2, window_bounds = array<i64: 8, 1>}, {transform_indices = @transform_3, window_bounds = array<i64: 8, 256>}]} {
    %c0 = arith.constant 0 : index
    %c0_0 = arith.constant 0 : index
    %0 = vector.load %arg2[%c0, %c0_0] : memref<8x256xf32, #tpu.memory_space<vmem>>, vector<8x256xf32>
    %c0_1 = arith.constant 0 : index
    %c0_2 = arith.constant 0 : index
    %1 = vector.load %arg3[%c0_1, %c0_2] : memref<8x1xf32, #tpu.memory_space<vmem>>, vector<8x1xf32>
    %2 = vector.broadcast %1 : vector<8x1xf32> to vector<8x256xf32>
    %3 = arith.mulf %0, %2 : vector<8x256xf32>
    %c0_3 = arith.constant 0 : index
    %c0_4 = arith.constant 0 : index
    %4 = vector.load %arg4[%c0_3, %c0_4] : memref<8x1xf32, #tpu.memory_space<vmem>>, vector<8x1xf32>
    %5 = vector.broadcast %4 : vector<8x1xf32> to vector<8x256xf32>
    %6 = arith.addf %3, %5 : vector<8x256xf32>
    %c0_5 = arith.constant 0 : index
    %c0_6 = arith.constant 0 : index
    %7 = vector.load %arg5[%c0_5, %c0_6] : memref<8x256xf32, #tpu.memory_space<vmem>>, vector<8x256xf32>
    tpu.vector_store %arg5[%c0_5, %c0_6], %6 {strides = array<i32>} : memref<8x256xf32, #tpu.memory_space<vmem>>, vector<8x256xf32>,
    return
  }
  func.func @transform_0(%arg0: i32, %arg1: i32) -> (i32, i32) {
    %c0_i32 = arith.constant 0 : i32
    return %arg0, %arg1 : i32, i32
  }
  func.func @transform_1(%arg0: i32, %arg1: i32) -> (i32, i32) {
    %c0_i32 = arith.constant 0 : i32
    %c0_i32_0 = arith.constant 0 : i32
    return %arg0, %c0_i32 : i32, i32
  }
  func.func @transform_2(%arg0: i32, %arg1: i32) -> (i32, i32) {
    %c0_i32 = arith.constant 0 : i32
    %c0_i32_0 = arith.constant 0 : i32
    return %arg0, %c0_i32 : i32, i32
  }
  func.func @transform_3(%arg0: i32, %arg1: i32) -> (i32, i32) {
    %c0_i32 = arith.constant 0 : i32
    return %arg0, %arg1 : i32, i32
  }
}

</mosaic_0001>

<llo_original>
// kernel: tpu_custom_call.1
$region0: #{tpu_custom_call.1}
  #allocation0 [shape = 'u32[]', space=smem, size = 0x4, offset = 0x4, fixed_abs, tag = 'smem constant byte address 0x4 - core index']
  #allocation1 [shape = 'u32[72,128]{1,0:T(1,128)}', space=vmem, size = 0x9000, scoped, tag = 'internal scratch']
  %s0 = inlined_call_operand.vmem [shape: f32[8,256], index: 0, kind: input, shape index: {}]
  %s1 = inlined_call_operand.vmem [shape: f32[8,1], index: 1, kind: input, shape index: {}]
  %s2 = inlined_call_operand.vmem [shape: f32[8,1], index: 2, kind: input, shape index: {}]
  %s3 = inlined_call_operand.hbm [shape: f32[8,256], index: 3, kind: output, shape index: {}]
  %s4 = sld [smem:[#allocation0]]
  $region22: #{tpu_custom_call.1} parent=0
    _
  %s6 = ssub.s32 1, %s4
  %s7 = scalar_select 0, %s6, %s4
  $region1: #{tpu_custom_call.1} parent=0
    #allocation2 [shape = 'u8[8192]{0}', space=vmem, size = 0x2000, scoped, tag = 'output window, operand 0, single buffered']
    #allocation3 [shape = 's32[1]{0}', space=sflag, size = 0x4, scoped, tag = 'scoped memory for tpu_custom_call.1']
    %8 = vsyncpa [#allocation3], 0
    // Predicated region
    $region2: #{tpu_custom_call.1} parent=1 // pred_check
      _
    $region3: #{tpu_custom_call.1} parent=1 // pred_check_branch
      %10 = sbr.rel (0) target = $region5
    $region4: #{tpu_custom_call.1} parent=1 // pred_region
      _
    $region5: #{tpu_custom_call.1} parent=1 // pred_fallthru
      _
    // Predicated region
    $region6: #{tpu_custom_call.1} parent=1 // pred_check
      _
    $region7: #{tpu_custom_call.1} parent=1 // pred_check_branch
      %12 = sbr.rel (0) target = $region9
    $region8: #{tpu_custom_call.1} parent=1 // pred_region
      _
    $region9: #{tpu_custom_call.1} parent=1 // pred_fallthru
      _
    // Predicated region
    $region10: #{tpu_custom_call.1} parent=1 // pred_check
      _
    $region11: #{tpu_custom_call.1} parent=1 // pred_check_branch
      %14 = sbr.rel (0) target = $region13
    $region12: #{tpu_custom_call.1} parent=1 // pred_region
      _
    $region13: #{tpu_custom_call.1} parent=1 // pred_fallthru
      _
    %v15 = vld [vmem:[%s0] sm:$0xff]
    %v16 = vld [vmem:[%s0 + $0x8] sm:$0xff]
    %v17 = vld [vmem:[%s1] sm:$0xff]
    %19 = vset.pattern.permute.xlu0 0
    %20 = vperm.xlu0 %19, %v17
    %v21 = vpop.permute.xlu0 %20
    %v23 = vmul.f32 %v15, %v21
    %v24 = vmul.f32 %v16, %v21
    %v25 = vld [vmem:[%s2] sm:$0xff]
    %27 = vset.pattern.permute.xlu0 0
    %28 = vperm.xlu0 %27, %v25
    %v29 = vpop.permute.xlu0 %28
    %v31 = vadd.f32 %v23, %v29
    %v32 = vadd.f32 %v24, %v29
    %33 = vst [vmem:[#allocation2] sm:$0xff] %v31
    %34 = vst [vmem:[#allocation2 + $0x8] sm:$0xff] %v32
    // Predicated region
    $region14: #{tpu_custom_call.1} parent=1 // pred_check
      _
    $region15: #{tpu_custom_call.1} parent=1 // pred_check_branch
      %36 = sbr.rel (0) target = $region17
    $region16: #{tpu_custom_call.1} parent=1 // pred_region
      %38 = vsyncadd [#allocation3], 0
      %s40 = sshll.u32 [#allocation2], 4
      %s41 = int_to_ptr.vmem [resolvable:$true] %s40
      %s42 = sshll.u32 %s3, 4
      %s43 = int_to_ptr.hbm [resolvable:$true] %s42
      %45 = dma.vmem_to_hbm [thread:$0]  %s41, 256, %s43, [#allocation3]
    $region17: #{tpu_custom_call.1} parent=1 // pred_fallthru
      _
    // Predicated region
    $region18: #{tpu_custom_call.1} parent=1 // pred_check
      _
    $region19: #{tpu_custom_call.1} parent=1 // pred_check_branch
      %47 = sbr.rel (0) target = $region21
    $region20: #{tpu_custom_call.1} parent=1 // pred_region
      %49 = dma.done [#allocation3], 256
    $region21: #{tpu_custom_call.1} parent=1 // pred_fallthru
      _
    %50 = vsyncpa [#allocation3], 1

</llo_original>
